<compile_context>
chip_gen: v5e
topology: v5e:2x2
jax: 0.10.0
libtpu: 0.0.40
codegen_flags: <defaults>
</compile_context>

<pallas_src>
import functools

import jax
import jax.numpy as jnp
import numpy as np
from jax.experimental import pallas as pl
from jax.experimental.pallas import tpu as pltpu


def _round_up(v, m):
    return (v + m - 1) // m * m


def _tpu_vmem_info():
    """Returns (per-core VMEM capacity bytes, likely multi-TensorCore chip)."""
    try:
        cap = int(pltpu.get_tpu_info().vmem_capacity_bytes)
    except Exception:
        # Query unavailable: assume the tightest (v7x-like) configuration.
        return 64 << 20, False
    # 64-MiB-per-core parts (v7x-class) have 2 TensorCores per chip.
    return cap, cap <= (64 << 20)


_VMEM_CAP, _MULTI_CORE = _tpu_vmem_info()
# Fused path: 4x double-buffered slabs + scratch must stay within ~75% of VMEM.
_FUSED_BUDGET = (3 * _VMEM_CAP) // 4            # ~96 MiB v5e/v6e, ~48 MiB v7x
# Never request VMEM right up to the physical limit (Mosaic internal scratch).
_VMEM_LIMIT_CAP = _VMEM_CAP - (8 << 20)         # ~120 MiB v5e/v6e, ~56 MiB v7x
# Tiled path: target bytes per (C, TS) tile.
_TILE_TARGET = (8 << 20) if _VMEM_CAP > (64 << 20) else (4 << 20)


def _fused_footprint(dtype, C, S, Cr):
    """Estimated VMEM need of the fused kernel (pipeline buffers + weights)."""
    itemsize = jnp.dtype(dtype).itemsize
    sub = max(8, 32 // itemsize)                       # sublane packing
    slab = _round_up(C, sub) * _round_up(S, 128) * itemsize
    weights = 2 * _round_up(C, 8) * _round_up(Cr, 128) * 4
    return 4 * slab + 2 * weights + (2 << 20)


# ---------------------------------------------------------------------------
# Fast path: fused single-slab kernel (1 HBM read + 1 HBM write per element).
# ---------------------------------------------------------------------------
def _se_fused_kernel(x_ref, w1t_ref, w2_ref, o_ref, *, inv_s):
    # x_ref / o_ref: (C, S) native dtype, S un-padded (Mosaic masks the ragged
    # tail vreg).  w1t: (C, Cr) f32; w2: (C, Cr) f32.
    pooled = jnp.sum(x_ref[...], axis=-1, keepdims=True,
                     dtype=jnp.float32) * inv_s                         # (C, 1)
    # Excite: two tiny bias-free FCs on the VPU/XLU (no N=1 MXU matmuls).
    h = jnp.maximum(
        jnp.sum(w1t_ref[...] * pooled, axis=0, keepdims=True), 0.0)     # (1, Cr)
    gate = jax.nn.sigmoid(
        jnp.sum(w2_ref[...] * h, axis=-1, keepdims=True))               # (C, 1)
    # Scale: multiply in f32 (matches the reference), single cast on store.
    o_ref[...] = (x_ref[...] * gate).astype(o_ref.dtype)


def _se_fused(x_flat, w1, w2):
    B, C, S = x_flat.shape
    Cr = w1.shape[0]

    # Hoisted weight prep: cast + transpose once in the wrapper.
    w1t = w1.astype(jnp.float32).T                     # (C, Cr)
    w2f = w2.astype(jnp.float32)                       # (C, Cr)

    vmem_limit = int(min(_fused_footprint(x_flat.dtype, C, S, Cr) + (8 << 20),
                         _VMEM_LIMIT_CAP))
    kernel = functools.partial(_se_fused_kernel, inv_s=1.0 / float(S))
    return pl.pallas_call(
        kernel,
        out_shape=jax.ShapeDtypeStruct((B, C, S), x_flat.dtype),
        grid_spec=pltpu.PrefetchScalarGridSpec(
            num_scalar_prefetch=0,
            grid=(B,),
            in_specs=[
                pl.BlockSpec((None, C, S), lambda b: (b, 0, 0)),
                pl.BlockSpec((C, Cr), lambda b: (0, 0)),
                pl.BlockSpec((C, Cr), lambda b: (0, 0)),
            ],
            out_specs=pl.BlockSpec((None, C, S), lambda b: (b, 0, 0)),
        ),
        compiler_params=pltpu.CompilerParams(
            dimension_semantics=("parallel",),
            vmem_limit_bytes=vmem_limit,
        ),
    )(x_flat, w1t, w2f)


# ---------------------------------------------------------------------------
# Fallback path: S-tiled pool(+FC) kernel  ->  fully-parallel scale kernel.
# ---------------------------------------------------------------------------
def _pool_gates_kernel(x_ref, w1t_ref, w2_ref, g_ref, *, inv_s, s_true, tile_s,
                       ragged):
    # Grid (B, n_s).  g_ref (C, 1) f32 doubles as the resident sum accumulator
    # across the S-tile axis; on the last tile it is overwritten with the gate.
    s = pl.program_id(1)

    @pl.when(s == 0)
    def _():
        g_ref[...] = jnp.zeros_like(g_ref)

    xv = x_ref[...]
    if ragged:
        # Mask lanes past the true S on the ragged last tile (edge blocks are
        # not zero-filled); in-bounds tiles the mask is all-true and free-ish.
        lane = jax.lax.broadcasted_iota(jnp.int32, xv.shape, 1) + s * tile_s
        xv = jnp.where(lane < s_true, xv, jnp.zeros_like(xv))
    g_ref[...] += jnp.sum(xv, axis=-1, keepdims=True, dtype=jnp.float32)

    @pl.when(s == pl.num_programs(1) - 1)
    def _():
        pooled = g_ref[...] * inv_s                                     # (C, 1)
        h = jnp.maximum(
            jnp.sum(w1t_ref[...] * pooled, axis=0, keepdims=True), 0.0)  # (1, Cr)
        g_ref[...] = jax.nn.sigmoid(
            jnp.sum(w2_ref[...] * h, axis=-1, keepdims=True))            # (C, 1)


def _pool_partial_kernel(x_ref, psum_ref, *, s_true, tile_s):
    # Grid (2, B, n_sp): parallel 2-way S-split for multi-TensorCore chips.
    # Each split emits a partial sum; phantom / ragged tiles are lane-masked.
    p, s = pl.program_id(0), pl.program_id(2)
    n_sp = pl.num_programs(2)

    @pl.when(s == 0)
    def _():
        psum_ref[...] = jnp.zeros_like(psum_ref)

    xv = x_ref[...]
    base = (p * n_sp + s) * tile_s
    lane = jax.lax.broadcasted_iota(jnp.int32, xv.shape, 1) + base
    xv = jnp.where(lane < s_true, xv, jnp.zeros_like(xv))
    psum_ref[...] += jnp.sum(xv, axis=-1, keepdims=True, dtype=jnp.float32)


def _scale_kernel(x_ref, g_ref, o_ref):
    # x_ref: (C, TS) native dtype; g_ref: (C, 1) f32 gates.  Multiply in f32,
    # cast once on store.  OOB lanes of the ragged edge block are dropped by
    # the output writeback.
    o_ref[...] = (x_ref[...] * g_ref[...]).astype(o_ref.dtype)


def _se_tiled(x_flat, w1, w2, tile_s, split_s):
    B, C, S = x_flat.shape
    Cr = w1.shape[0]
    itemsize = jnp.dtype(x_flat.dtype).itemsize
    sub = max(8, 32 // itemsize)
    c_pad = _round_up(C, sub)

    if tile_s is None:
        tile_s = max(128, (_TILE_TARGET // (c_pad * itemsize)) // 128 * 128)
    tile_s = min(tile_s, _round_up(S, 128))
    assert tile_s % 128 == 0, "tile_s must be a multiple of 128 lanes"
    n_s = pl.cdiv(S, tile_s)
    ragged = (S % tile_s) != 0

    tile_bytes = c_pad * tile_s * itemsize
    vmem_limit = int(min(6 * tile_bytes + (4 << 20), _VMEM_LIMIT_CAP))
    inv_s = 1.0 / float(S)

    w1t = w1.astype(jnp.float32).T                     # (C, Cr)
    w2f = w2.astype(jnp.float32)                       # (C, Cr)

    split_s = split_s and n_s >= 2
    if split_s:
        # Phase 1a: two parallel partial sums per (b, c) -> both TCs busy even
        # for B == 1; combined + excited with tiny XLA ops.
        n_sp = pl.cdiv(n_s, 2)
        x_map = lambda p, b, s: (b, 0, jnp.minimum(p * n_sp + s, n_s - 1))
        psum = pl.pallas_call(
            functools.partial(_pool_partial_kernel, s_true=S, tile_s=tile_s),
            out_shape=jax.ShapeDtypeStruct((2, B, C, 1), jnp.float32),
            grid_spec=pltpu.PrefetchScalarGridSpec(
                num_scalar_prefetch=0,
                grid=(2, B, n_sp),
                in_specs=[pl.BlockSpec((None, C, tile_s), x_map)],
                out_specs=pl.BlockSpec((None, None, C, 1),
                                       lambda p, b, s: (p, b, 0, 0)),
            ),
            compiler_params=pltpu.CompilerParams(
                dimension_semantics=("parallel", "parallel", "arbitrary"),
                vmem_limit_bytes=vmem_limit,
            ),
        )(x_flat)
        pooled = jnp.sum(psum, axis=0)[:, :, 0] * inv_s                # (B, C)
        h = jnp.maximum(pooled @ w1t, 0.0)                             # (B, Cr)
        gates = jax.nn.sigmoid(h @ w2f.T)[:, :, None]                  # (B, C, 1)
    else:
        # Phase 1b: pool + excitation fused in one kernel (no XLA round trip).
        gates = pl.pallas_call(
            functools.partial(_pool_gates_kernel, inv_s=inv_s, s_true=S,
                              tile_s=tile_s, ragged=ragged),
            out_shape=jax.ShapeDtypeStruct((B, C, 1), jnp.float32),
            grid_spec=pltpu.PrefetchScalarGridSpec(
                num_scalar_prefetch=0,
                grid=(B, n_s),
                in_specs=[
                    pl.BlockSpec((None, C, tile_s), lambda b, s: (b, 0, s)),
                    pl.BlockSpec((C, Cr), lambda b, s: (0, 0)),
                    pl.BlockSpec((C, Cr), lambda b, s: (0, 0)),
                ],
                out_specs=pl.BlockSpec((None, C, 1), lambda b, s: (b, 0, 0)),
            ),
            compiler_params=pltpu.CompilerParams(
                dimension_semantics=("parallel", "arbitrary"),
                vmem_limit_bytes=vmem_limit,
            ),
        )(x_flat, w1t, w2f)

    # Phase 2: broadcast scale, tiled over S; both grid axes parallel.
    return pl.pallas_call(
        _scale_kernel,
        out_shape=jax.ShapeDtypeStruct((B, C, S), x_flat.dtype),
        grid_spec=pltpu.PrefetchScalarGridSpec(
            num_scalar_prefetch=0,
            grid=(B, n_s),
            in_specs=[
                pl.BlockSpec((None, C, tile_s), lambda b, s: (b, 0, s)),
                pl.BlockSpec((None, C, 1), lambda b, s: (b, 0, 0)),
            ],
            out_specs=pl.BlockSpec((None, C, tile_s), lambda b, s: (b, 0, s)),
        ),
        compiler_params=pltpu.CompilerParams(
            dimension_semantics=("parallel", "parallel"),
            vmem_limit_bytes=vmem_limit,
        ),
    )(x_flat, gates)


# ---------------------------------------------------------------------------
# Public wrapper.
# ---------------------------------------------------------------------------
@functools.partial(jax.jit,
                   static_argnames=("force_tiled", "tile_s", "force_split"))
def se_layer_3d(x, w1, w2, *, force_tiled=False, tile_s=None, force_split=False):
    """SELayer3d forward. x: (B, C, D, H, W); w1: (C//r, C); w2: (C, C//r)."""
    B, C, D, H, W = x.shape
    S = D * H * W
    Cr = w1.shape[0]
    x_flat = x.reshape(B, C, S)            # free metadata reshape (row-major)

    footprint = _fused_footprint(x.dtype, C, S, Cr)
    # Multi-TensorCore chips (v7x-class): a grid of (B,) keeps at most B cores
    # busy, so for B == 1 prefer the tiled path with a parallel S-split.
    want_split = force_split or (_MULTI_CORE and B == 1
                                 and footprint > (8 << 20))
    use_tiled = force_tiled or want_split or footprint > _FUSED_BUDGET

    if use_tiled:
        out_flat = _se_tiled(x_flat, w1, w2, tile_s, want_split)
    else:
        out_flat = _se_fused(x_flat, w1, w2)
    return out_flat.reshape(B, C, D, H, W)


def se_layer_3d_ref(x, w1, w2):
    """Pure-JAX reference mirroring the PyTorch forward."""
    y = jnp.mean(x.astype(jnp.float32), axis=(2, 3, 4))               # (B, C)
    y = jnp.maximum(y @ w1.astype(jnp.float32).T, 0.0)                # (B, C//r)
    y = jax.nn.sigmoid(y @ w2.astype(jnp.float32).T)                  # (B, C)
    return (x.astype(jnp.float32) * y[:, :, None, None, None]).astype(x.dtype)


if __name__ == "__main__":
    def run_case(shape, reduction, **kw):
        B, C, D, H, W = shape
        hidden = max(1, C // reduction)
        key = jax.random.PRNGKey(0)
        kx, k1, k2 = jax.random.split(key, 3)
        x = jax.random.normal(kx, shape, dtype=jnp.float32)
        # PyTorch nn.Linear layout: (out_features, in_features), bias-free.
        w1 = jax.random.normal(k1, (hidden, C), dtype=jnp.float32) * 0.3
        w2 = jax.random.normal(k2, (C, hidden), dtype=jnp.float32) * 0.3
        ref = se_layer_3d_ref(x, w1, w2)
        out = jax.block_until_ready(se_layer_3d(x, w1, w2, **kw))
        np.testing.assert_allclose(np.asarray(out), np.asarray(ref),
                                   rtol=1e-5, atol=1e-5)

    # Fused fast path: lane-aligned S and ragged S (no pad / no slice).
    run_case((2, 8, 8, 8, 8), 4)
    run_case((2, 8, 5, 6, 7), 4)
    # Tiled fallback: multi-tile, ragged last tile, and the parallel S-split.
    run_case((2, 8, 8, 8, 8), 4, force_tiled=True, tile_s=128)
    run_case((2, 8, 5, 6, 7), 4, force_tiled=True, tile_s=128)
    run_case((1, 8, 5, 6, 7), 4, force_tiled=True, tile_s=128, force_split=True)

    print("KERNEL_OK")
</pallas_src>

<mosaic_0001>
module attributes {stable_mosaic.version = 11 : i64} {
  func.func @_se_fused_kernel(%arg0: i32, %arg1: memref<1x8x512xf32, #tpu.memory_space<vmem>>, %arg2: memref<8x2xf32, #tpu.memory_space<vmem>>, %arg3: memref<8x2xf32, #tpu.memory_space<vmem>>, %arg4: memref<1x8x512xf32, #tpu.memory_space<vmem>>) attributes {dimension_semantics = [#tpu.dimension_semantics<parallel>], iteration_bounds = array<i64: 2>, scalar_prefetch = 0 : i64, scratch_operands = 0 : i64, tpu.core_type = #tpu.core_type<tc>, window_params = [{transform_indices = @transform_0, window_bounds = array<i64: 1, 8, 512>}, {pipeline_mode = #tpu.pipeline_mode<synchronous>, transform_indices = @transform_1, window_bounds = array<i64: 8, 2>}, {pipeline_mode = #tpu.pipeline_mode<synchronous>, transform_indices = @transform_2, window_bounds = array<i64: 8, 2>}, {transform_indices = @transform_3, window_bounds = array<i64: 1, 8, 512>}]} {
    %c0 = arith.constant 0 : index
    %c0_0 = arith.constant 0 : index
    %c0_1 = arith.constant 0 : index
    %0 = vector.load %arg1[%c0, %c0_0, %c0_1] : memref<1x8x512xf32, #tpu.memory_space<vmem>>, vector<1x8x512xf32>
    %1 = vector.shape_cast %0 : vector<1x8x512xf32> to vector<8x512xf32>
    %cst = arith.constant dense<0.000000e+00> : vector<8xf32>
    %2 = vector.multi_reduction <add>, %1, %cst [1] : vector<8x512xf32> to vector<8xf32>
    %3 = vector.shape_cast %2 : vector<8xf32> to vector<8x1xf32>
    %cst_2 = arith.constant 0.001953125 : f32
    %4 = vector.broadcast %cst_2 : f32 to vector<8x1xf32>
    %5 = arith.mulf %3, %4 : vector<8x1xf32>
    %c0_3 = arith.constant 0 : index
    %c0_4 = arith.constant 0 : index
    %6 = vector.load %arg2[%c0_3, %c0_4] : memref<8x2xf32, #tpu.memory_space<vmem>>, vector<8x2xf32>
    %7 = vector.broadcast %5 : vector<8x1xf32> to vector<8x2xf32>
    %8 = arith.mulf %6, %7 : vector<8x2xf32>
    %cst_5 = arith.constant dense<0.000000e+00> : vector<2xf32>
    %9 = vector.multi_reduction <add>, %8, %cst_5 [0] : vector<8x2xf32> to vector<2xf32>
    %10 = vector.shape_cast %9 : vector<2xf32> to vector<1x2xf32>
    %cst_6 = arith.constant 0.000000e+00 : f32
    %11 = vector.broadcast %cst_6 : f32 to vector<1x2xf32>
    %12 = arith.maximumf %10, %11 : vector<1x2xf32>
    %c0_7 = arith.constant 0 : index
    %c0_8 = arith.constant 0 : index
    %13 = vector.load %arg3[%c0_7, %c0_8] : memref<8x2xf32, #tpu.memory_space<vmem>>, vector<8x2xf32>
    %14 = vector.broadcast %12 : vector<1x2xf32> to vector<8x2xf32>
    %15 = arith.mulf %13, %14 : vector<8x2xf32>
    %cst_9 = arith.constant dense<0.000000e+00> : vector<8xf32>
    %16 = vector.multi_reduction <add>, %15, %cst_9 [1] : vector<8x2xf32> to vector<8xf32>
    %17 = vector.shape_cast %16 : vector<8xf32> to vector<8x1xf32>
    %18 = arith.negf %17 : vector<8x1xf32>
    %19 = math.exp %18 : vector<8x1xf32>
    %cst_10 = arith.constant 1.000000e+00 : f32
    %20 = vector.broadcast %cst_10 : f32 to vector<8x1xf32>
    %21 = arith.addf %20, %19 : vector<8x1xf32>
    %22 = arith.divf %20, %21 : vector<8x1xf32>
    %c0_11 = arith.constant 0 : index
    %c0_12 = arith.constant 0 : index
    %c0_13 = arith.constant 0 : index
    %23 = vector.load %arg1[%c0_11, %c0_12, %c0_13] : memref<1x8x512xf32, #tpu.memory_space<vmem>>, vector<1x8x512xf32>
    %24 = vector.shape_cast %23 : vector<1x8x512xf32> to vector<8x512xf32>
    %25 = vector.broadcast %22 : vector<8x1xf32> to vector<8x512xf32>
    %26 = arith.mulf %24, %25 : vector<8x512xf32>
    %c0_14 = arith.constant 0 : index
    %c0_15 = arith.constant 0 : index
    %c0_16 = arith.constant 0 : index
    %27 = vector.load %arg4[%c0_14, %c0_15, %c0_16] : memref<1x8x512xf32, #tpu.memory_space<vmem>>, vector<1x8x512xf32>
    %28 = vector.shape_cast %27 : vector<1x8x512xf32> to vector<8x512xf32>
    %29 = vector.shape_cast %26 : vector<8x512xf32> to vector<1x8x512xf32>
    tpu.vector_store %arg4[%c0_14, %c0_15, %c0_16], %29 {strides = array<i32>} : memref<1x8x512xf32, #tpu.memory_space<vmem>>, vector<1x8x512xf32>,
    return
  }
  func.func @transform_0(%arg0: i32) -> (i32, i32, i32) {
    %c0_i32 = arith.constant 0 : i32
    %c0_i32_0 = arith.constant 0 : i32
    %c0_i32_1 = arith.constant 0 : i32
    return %arg0, %c0_i32, %c0_i32_0 : i32, i32, i32
  }
  func.func @transform_1(%arg0: i32) -> (i32, i32) {
    %c0_i32 = arith.constant 0 : i32
    %c0_i32_0 = arith.constant 0 : i32
    %c0_i32_1 = arith.constant 0 : i32
    return %c0_i32, %c0_i32_0 : i32, i32
  }
  func.func @transform_2(%arg0: i32) -> (i32, i32) {
    %c0_i32 = arith.constant 0 : i32
    %c0_i32_0 = arith.constant 0 : i32
    %c0_i32_1 = arith.constant 0 : i32
    return %c0_i32, %c0_i32_0 : i32, i32
  }
  func.func @transform_3(%arg0: i32) -> (i32, i32, i32) {
    %c0_i32 = arith.constant 0 : i32
    %c0_i32_0 = arith.constant 0 : i32
    %c0_i32_1 = arith.constant 0 : i32
    return %arg0, %c0_i32, %c0_i32_0 : i32, i32, i32
  }
}

</mosaic_0001>

<llo_original>
// kernel: se_layer_3d.1
$region0: #{se_layer_3d.1}
  #allocation0 [shape = 'u32[]', space=smem, size = 0x4, offset = 0x4, fixed_abs, tag = 'smem constant byte address 0x4 - core index']
  #allocation1 [shape = 'u32[72,128]{1,0:T(1,128)}', space=vmem, size = 0x9000, scoped, tag = 'internal scratch']
  %s0 = inlined_call_operand.vmem [shape: f32[2,8,512], index: 0, kind: input, shape index: {}]
  %s1 = inlined_call_operand.vmem [shape: f32[8,2], index: 1, kind: input, shape index: {}]
  %s2 = inlined_call_operand.vmem [shape: f32[8,2], index: 2, kind: input, shape index: {}]
  %s3 = inlined_call_operand.vmem [shape: f32[2,8,512], index: 3, kind: output, shape index: {}]
  %s4 = sld [smem:[#allocation0]]
  $region45: #{se_layer_3d.1} parent=0
    _
  %s6 = ssub.s32 1, %s4
  %s7 = scalar_select 0, %s6, %s4
  loop: start=0, step=1, limit=4
  $region2: #{se_layer_3d.1} parent=0 // loop_pre_header
    _
  $region3: #{se_layer_3d.1} parent=0 // loop_header
    %s9 = sphi 0, %s13
    %p10 = scmp.ge.s32.totalorder %s9, 4
    %s19 = sphi 0, %s21
    %s22 = sphi 0, %s19
    %s23 = sphi 0, %s22
    %s39 = sphi 0, %s23
    %s43 = sphi 0, %s43
    %s45 = sphi 0, %s43
    %s46 = sphi 0, %s45
    %s60 = sphi 0, %s46
    %s64 = sphi 0, %s64
    %s66 = sphi 0, %s64
    %s67 = sphi 0, %s66
    %s81 = sphi 0, %s67
    %s87 = sphi 0, %s89
    %s90 = sphi 0, %s87
    %s91 = sphi 0, %s90
    %s107 = sphi 0, %s91
  $region4: #{se_layer_3d.1} parent=0 // loop_header_branch
    %12 = sbr.rel (%p10) target = $region8
  $region5: #{se_layer_3d.1} parent=0 // loop_body
    %s14 = ssub.s32 %s9, 1
    %s15 = ssub.s32 %s9, 2
    %s16 = sadd.s32 %s9, 1
    %s17 = ssub.s32 %s9, %s16
    %p18 = scmp.eq.s32.totalorder %s17, 0
    %s20 = sadd.s32 %s19, 1
    %s21 = scalar_select %p18, %s19, %s20
    %p24 = pneg %p18
    %p25 = scmp.eq.s32.totalorder %s9, 1
    %p26 = por %p24, %p25
    %p27 = scmp.ne.s32.totalorder %s19, %s22
    %p28 = scmp.eq.s32.totalorder %s9, 0
    %p29 = por %p27, %p28
    %p30 = scmp.ne.s32.totalorder %s19, %s22
    %p31 = scmp.eq.s32.totalorder %s14, 1
    %p32 = por %p30, %p31
    %p33 = scmp.ne.s32.totalorder %s22, %s23
    %p34 = scmp.eq.s32.totalorder %s14, 0
    %p35 = por %p33, %p34
    %p36 = scmp.ne.s32.totalorder %s22, %s23
    %p37 = scmp.eq.s32.totalorder %s15, 1
    %p38 = por %p36, %p37
    %p40 = scmp.ne.s32.totalorder %s23, %s39
    %p41 = scmp.eq.s32.totalorder %s15, 0
    %p42 = por %p40, %p41
    %s44 = sadd.s32 %s43, 1
    %p47 = scmp.eq.s32.totalorder %s9, 1
    %p48 = scmp.ne.s32.totalorder %s43, %s45
    %p49 = scmp.eq.s32.totalorder %s9, 0
    %p50 = por %p48, %p49
    %p51 = scmp.ne.s32.totalorder %s43, %s45
    %p52 = scmp.eq.s32.totalorder %s14, 1
    %p53 = por %p51, %p52
    %p54 = scmp.ne.s32.totalorder %s45, %s46
    %p55 = scmp.eq.s32.totalorder %s14, 0
    %p56 = por %p54, %p55
    %p57 = scmp.ne.s32.totalorder %s45, %s46
    %p58 = scmp.eq.s32.totalorder %s15, 1
    %p59 = por %p57, %p58
    %p61 = scmp.ne.s32.totalorder %s46, %s60
    %p62 = scmp.eq.s32.totalorder %s15, 0
    %p63 = por %p61, %p62
    %s65 = sadd.s32 %s64, 1
    %p68 = scmp.eq.s32.totalorder %s9, 1
    %p69 = scmp.ne.s32.totalorder %s64, %s66
    %p70 = scmp.eq.s32.totalorder %s9, 0
    %p71 = por %p69, %p70
    %p72 = scmp.ne.s32.totalorder %s64, %s66
    %p73 = scmp.eq.s32.totalorder %s14, 1
    %p74 = por %p72, %p73
    %p75 = scmp.ne.s32.totalorder %s66, %s67
    %p76 = scmp.eq.s32.totalorder %s14, 0
    %p77 = por %p75, %p76
    %p78 = scmp.ne.s32.totalorder %s66, %s67
    %p79 = scmp.eq.s32.totalorder %s15, 1
    %p80 = por %p78, %p79
    %p82 = scmp.ne.s32.totalorder %s67, %s81
    %p83 = scmp.eq.s32.totalorder %s15, 0
    %p84 = por %p82, %p83
    %s85 = ssub.s32 %s9, %s16
    %p86 = scmp.eq.s32.totalorder %s85, 0
    %s88 = sadd.s32 %s87, 1
    %s89 = scalar_select %p86, %s87, %s88
    %p92 = pneg %p86
    %p93 = scmp.eq.s32.totalorder %s9, 1
    %p94 = por %p92, %p93
    %p95 = scmp.ne.s32.totalorder %s87, %s90
    %p96 = scmp.eq.s32.totalorder %s9, 0
    %p97 = por %p95, %p96
    %p98 = scmp.ne.s32.totalorder %s87, %s90
    %p99 = scmp.eq.s32.totalorder %s14, 1
    %p100 = por %p98, %p99
    %p101 = scmp.ne.s32.totalorder %s90, %s91
    %p102 = scmp.eq.s32.totalorder %s14, 0
    %p103 = por %p101, %p102
    %p104 = scmp.ne.s32.totalorder %s90, %s91
    %p105 = scmp.eq.s32.totalorder %s15, 1
    %p106 = por %p104, %p105
    %p108 = scmp.ne.s32.totalorder %s91, %s107
    %p109 = scmp.eq.s32.totalorder %s15, 0
    %p110 = por %p108, %p109
    %p111 = scmp.le.s32.totalorder 1, %s9
    %p112 = scmp.lt.s32.totalorder %s9, 3
    %p113 = pnand %p111, %p112
    %p114 = pneg %p113
    // Predicated region
    $region9: #{se_layer_3d.1} parent=5 // pred_check
      _
    $region10: #{se_layer_3d.1} parent=5 // pred_check_branch
      %116 = sbr.rel (%p113) target = $region12
    $region11: #{se_layer_3d.1} parent=5 // pred_region
      %s117 = ssub.s32 %s9, 1
      // Predicated region
      $region13: #{se_layer_3d.1} parent=11 // pred_check
        %p118 = pneg %p56
      $region14: #{se_layer_3d.1} parent=11 // pred_check_branch
        %120 = sbr.rel (%p118) target = $region16
      $region15: #{se_layer_3d.1} parent=11 // pred_region
        _
      $region16: #{se_layer_3d.1} parent=11 // pred_fallthru
        _
      // Predicated region
      $region17: #{se_layer_3d.1} parent=11 // pred_check
        %p121 = pneg %p77
      $region18: #{se_layer_3d.1} parent=11 // pred_check_branch
        %123 = sbr.rel (%p121) target = $region20
      $region19: #{se_layer_3d.1} parent=11 // pred_region
        _
      $region20: #{se_layer_3d.1} parent=11 // pred_fallthru
        _
    $region12: #{se_layer_3d.1} parent=5 // pred_fallthru
      _
    %p124 = scmp.lt.s32.totalorder %s9, 2
    // Predicated region
    $region21: #{se_layer_3d.1} parent=5 // pred_check
      %p125 = pneg %p124
    $region22: #{se_layer_3d.1} parent=5 // pred_check_branch
      %127 = sbr.rel (%p125) target = $region24
    $region23: #{se_layer_3d.1} parent=5 // pred_region
      // Predicated region
      $region25: #{se_layer_3d.1} parent=23 // pred_check
        %p128 = pneg %p29
      $region26: #{se_layer_3d.1} parent=23 // pred_check_branch
        %130 = sbr.rel (%p128) target = $region28
      $region27: #{se_layer_3d.1} parent=23 // pred_region
        %p131 = scmp.lt.s32.totalorder %s9, 1
        %s132 = scalar_select %p131, %s9, 1
        %s133 = smul.addr %s132, 4
        %s134 = smul.addr %s133, 8
        %s135 = scalar_lea.vmem %s0, %s134
      $region28: #{se_layer_3d.1} parent=23 // pred_fallthru
        _
    $region24: #{se_layer_3d.1} parent=5 // pred_fallthru
      _
    %p136 = scmp.le.s32.totalorder 1, %s9
    %p137 = scmp.lt.s32.totalorder %s9, 3
    %p138 = pnand %p136, %p137
    %p139 = pneg %p138
    // Predicated region
    $region29: #{se_layer_3d.1} parent=5 // pred_check
      _
    $region30: #{se_layer_3d.1} parent=5 // pred_check_branch
      %141 = sbr.rel (%p138) target = $region32
    $region31: #{se_layer_3d.1} parent=5 // pred_region
      %s142 = ssub.s32 %s9, 1
      %p143 = scmp.lt.s32.totalorder %s14, 1
      %s144 = scalar_select %p143, %s14, 1
      %s145 = smul.addr %s144, 4
      %s146 = smul.addr %s145, 8
      %s147 = scalar_lea.vmem %s0, %s146
      %p148 = pneg %p35
      %p149 = pneg %p32
      %p150 = pneg %p56
      %p151 = pneg %p53
      %p152 = pneg %p77
      %p153 = pneg %p74
      %p154 = pneg %p103
      %p155 = pneg %p100
      %p156 = scmp.lt.s32.totalorder %s14, 1
      %s157 = scalar_select %p156, %s14, 1
      %s158 = smul.addr %s157, 4
      %s159 = smul.addr %s158, 8
      %s160 = scalar_lea.vmem %s3, %s159
      %p161 = scmp.lt.s32.totalorder %s14, 1
      %s162 = scalar_select %p161, %s14, 1
      %s163 = smul.addr %s162, 4
      %s164 = smul.addr %s163, 8
      %s165 = scalar_lea.vmem %s0, %s164
      %p166 = scmp.lt.s32.totalorder %s14, 1
      %s167 = scalar_select %p166, %s14, 1
      %s168 = smul.addr %s167, 4
      %s169 = smul.addr %s168, 8
      %s170 = scalar_lea.vmem %s3, %s169
      %v171 = vld [vmem:[%s165] sm:$0xff]
      %v172 = vld [vmem:[%s165 + $0x8] sm:$0xff]
      %v173 = vld [vmem:[%s165 + $0x10] sm:$0xff]
      %v174 = vld [vmem:[%s165 + $0x18] sm:$0xff]
      %v175 = vadd.f32 %v171, %v172
      %v176 = vadd.f32 %v175, %v173
      %v177 = vadd.f32 %v176, %v174
      %178 = vadd.xlane.f32.xlu0 %v177
      %v179 = vpop.xlane.xlu0 %178
      %v180 = vmul.f32 %v179, 0.001953125
      %v181 = vld [vmem:[%s1] sm:$0xff]
      %v182 = vmul.f32 %v181, %v180
      %vm183 = vcmask 15360
      %v184 = vsel %vm183, %v182, 0.0
      %v185 = vrot.slane %v184, 4
      %v186 = vadd.f32 %v184, %v185
      %v187 = vrot.slane %v186, 2
      %v188 = vadd.f32 %v186, %v187
      %v189 = vrot.slane %v188, 1
      %v190 = vadd.f32 %v188, %v189
      %v191 = vmax.f32 %v190, 0.0
      %v192 = vld [vmem:[%s2] sm:$0xff]
      %v193 = vmul.f32 %v192, %v191
      %v194 = vsel %vm183, %v193, 0.0
      %195 = vadd.xlane.f32.xlu0 %v194
      %v196 = vpop.xlane.xlu0 %195
      %v197 = vxor.u32 %v196, 2147483648
      %v198 = vmul.f32 %v197, 1.442695
      %v199 = vpow.pop %v198
      %v200 = vadd.f32 %v199, 1.0
      %v201 = vrcp.pop %v200
      %v202 = vmul.f32 %v200, %v201
      %v203 = vsub.f32 1.0, %v202
      %v204 = vmul.f32 %v201, %v203
      %v205 = vadd.f32 %v201, %v204
      %vm206 = vweird.f32 %v200
      %vm207 = vweird.f32 %v201
      %vm208 = vmor %vm206, %vm207
      %v209 = vsel %vm208, %v201, %v205
      %v210 = vand.u32 2147483647, %v200
      %vm211 = vcmp.eq.f32.partialorder %v210, 8.507059e+37
      %v212 = vand.u32 %v200, 2147483648
      %v213 = vor.u32 1.1754944e-38, %v212
      %v214 = vsel %vm211, %v213, %v209
      %v215 = vmul.f32 1.0, %v214
      %v216 = vmul.f32 %v171, %v215
      %v217 = vmul.f32 %v172, %v215
      %v218 = vmul.f32 %v173, %v215
      %v219 = vmul.f32 %v174, %v215
      %220 = vst [vmem:[%s170] sm:$0xff] %v216
      %221 = vst [vmem:[%s170 + $0x8] sm:$0xff] %v217
      %222 = vst [vmem:[%s170 + $0x10] sm:$0xff] %v218
      %223 = vst [vmem:[%s170 + $0x18] sm:$0xff] %v219
      %p224 = scmp.lt.s32.totalorder %s14, 1
      %s225 = scalar_select %p224, %s14, 1
      %s226 = smul.addr %s225, 4
      %s227 = smul.addr %s226, 8
      %s228 = scalar_lea.vmem %s3, %s227
      // Predicated region
      $region33: #{se_layer_3d.1} parent=31 // pred_check
        %p229 = pneg %p100
      $region34: #{se_layer_3d.1} parent=31 // pred_check_branch
        %231 = sbr.rel (%p229) target = $region36
      $region35: #{se_layer_3d.1} parent=31 // pred_region
        _
      $region36: #{se_layer_3d.1} parent=31 // pred_fallthru
        _
    $region32: #{se_layer_3d.1} parent=5 // pred_fallthru
      _
    %p232 = scmp.le.s32.totalorder 2, %s9
    // Predicated region
    $region37: #{se_layer_3d.1} parent=5 // pred_check
      %p233 = pneg %p232
    $region38: #{se_layer_3d.1} parent=5 // pred_check_branch
      %235 = sbr.rel (%p233) target = $region40
    $region39: #{se_layer_3d.1} parent=5 // pred_region
      %s236 = ssub.s32 %s9, 2
      // Predicated region
      $region41: #{se_layer_3d.1} parent=39 // pred_check
        %p237 = pneg %p106
      $region42: #{se_layer_3d.1} parent=39 // pred_check_branch
        %239 = sbr.rel (%p237) target = $region44
      $region43: #{se_layer_3d.1} parent=39 // pred_region
        %p240 = scmp.lt.s32.totalorder %s15, 1
        %s241 = scalar_select %p240, %s15, 1
        %s242 = smul.addr %s241, 4
        %s243 = smul.addr %s242, 8
        %s244 = scalar_lea.vmem %s3, %s243
      $region44: #{se_layer_3d.1} parent=39 // pred_fallthru
        _
    $region40: #{se_layer_3d.1} parent=5 // pred_fallthru
      _
  $region6: #{se_layer_3d.1} parent=0 // loop_footer
    %s13 = sadd.s32 1, %s9
  $region7: #{se_layer_3d.1} parent=0 // loop_footer_branch
    %8 = sbr.rel target = $region3
  $region8: #{se_layer_3d.1} parent=0 // loop_exit
    _

</llo_original>
